<compile_context>
chip_gen: v5e
topology: v5e:2x2
jax: 0.10.0
libtpu: 0.0.40
codegen_flags: <defaults>
</compile_context>

<pallas_src>
import numpy as np
import jax
import jax.numpy as jnp
from jax.experimental import pallas as pl
from jax.experimental.pallas import tpu as pltpu

# ----------------------------- configuration --------------------------------
T, B = 8, 2                 # leading time / batch dims
OBS_DIM = 16                # prod(observation_shape)
ACTION_SIZE = 2             # required by the hard-coded [a_long_shift, 0] offset
H_BODY = 32                 # body MLP hidden size (hidden_sizes=(32, 32))
H_VAR = 64                  # var_body MLP hidden size (fixed [64, 64] in module)
PACK = 128                  # packed lane width (body + var branches + padding)
A_LONG_SHIFT = 0.0
VAR_CLIP = 1e-6
INIT_LOG_STD = 0.0

# packed hidden-column layout: [0:32) body | [32:96) var_body | [96:128) zero pad
# packed head-column layout:   0,1 = mu ; 2 = value ; 3 = constraint ;
#                              4 = constraint_var ; 5.. = padding

# single parameter slab: row-stacked (392, 128) f32
#   rows   0:128  w1p  (rows 16:128 zero)
#   rows 128:256  w2p  (block-diag)
#   rows 256:384  w3p  (heads)
#   row  384      obs_mean  (lanes 0:16, rest zero)
#   row  385      inv_std   (lanes 0:16, rest zero)
#   row  386      b1 packed
#   row  387      b2 packed
#   row  388      head bias
#   row  389      post-tanh mu offset ([a_long_shift, 0, ...])
#   rows 390:392  zero padding (8-row alignment)
W1_R0, W2_R0, W3_R0, AUX_R0 = 0, 128, 256, 384
SLAB_ROWS = 392
ROW_TILE_MAX = 512          # rows per grid step when tb is batched up


# ------------------------------- kernel --------------------------------------
def dcppo_kernel(obs_ref, slab_ref, out_ref):
    # static, tile-aligned views into the single parameter slab (no extra DMAs)
    w1 = slab_ref[W1_R0:W1_R0 + PACK, :]
    w2 = slab_ref[W2_R0:W2_R0 + PACK, :]
    w3 = slab_ref[W3_R0:W3_R0 + PACK, :]
    aux = slab_ref[AUX_R0:AUX_R0 + 8, :]          # one (8, 128) tile
    mean = aux[0:1, :]
    inv_std = aux[1:2, :]
    b1 = aux[2:3, :]
    b2 = aux[3:4, :]
    bh = aux[4:5, :]
    mu_off = aux[5:6, :]

    # observation normalization: clamp((obs - mean) * rsqrt(max(var, clip)), -10, 10)
    # (pad lanes: obs = mean = inv_std = 0 -> x = 0, and w1 pad rows are zero)
    x = jnp.clip((obs_ref[...] - mean) * inv_std, -10.0, 10.0)

    # packed layers 1 + 2 (body MLP || var_body MLP, tanh nonlinearity)
    h1 = jnp.tanh(jnp.dot(x, w1, preferred_element_type=jnp.float32) + b1)
    h2 = jnp.tanh(jnp.dot(h1, w2, preferred_element_type=jnp.float32) + b2)

    # packed heads: one MXU matmul produces [mu | v | c | cv | 0-pad]
    heads = jnp.dot(h2, w3, preferred_element_type=jnp.float32) + bh

    # per-column post-ops on one lane-dense slab:
    #   cols 0,1 : tanh(.) + [a_long_shift, 0]
    #   cols 2,3 : identity (value / constraint)
    #   col  4   : softplus(.) * 0.1 (constraint_var)
    col = jax.lax.broadcasted_iota(jnp.int32, heads.shape, 1)
    mu_like = jnp.tanh(heads) + mu_off
    cv_like = jax.nn.softplus(heads) * 0.1
    out_ref[...] = jnp.where(col < ACTION_SIZE, mu_like,
                             jnp.where(col == ACTION_SIZE + 2, cv_like, heads))


# --------------------------- parameter handling -------------------------------
def make_params(key):
    """Deterministic synthetic parameters (shapes match the module's __init__)."""
    ks = jax.random.split(key, 16)
    s = 0.1
    return {
        "obs_mean": jax.random.normal(ks[0], (OBS_DIM,), jnp.float32) * 0.5,
        "obs_var": jax.random.uniform(ks[1], (OBS_DIM,), jnp.float32,
                                      minval=0.5, maxval=1.5),
        # body MLP
        "w1": jax.random.normal(ks[2], (OBS_DIM, H_BODY), jnp.float32) * s,
        "b1": jax.random.normal(ks[3], (H_BODY,), jnp.float32) * s,
        "w2": jax.random.normal(ks[4], (H_BODY, H_BODY), jnp.float32) * s,
        "b2": jax.random.normal(ks[5], (H_BODY,), jnp.float32) * s,
        # heads
        "wmu": jax.random.normal(ks[6], (H_BODY, ACTION_SIZE), jnp.float32) * s,
        "bmu": jax.random.normal(ks[7], (ACTION_SIZE,), jnp.float32) * s,
        "wv": jax.random.normal(ks[8], (H_BODY, 1), jnp.float32) * s,
        "bv": jax.random.normal(ks[9], (1,), jnp.float32) * s,
        "wc": jax.random.normal(ks[10], (H_BODY, 1), jnp.float32) * s,
        "bc": jax.random.normal(ks[11], (1,), jnp.float32) * s,
        # var_body MLP + constraint_var head
        "q1w": jax.random.normal(ks[12], (OBS_DIM, H_VAR), jnp.float32) * s,
        "q1b": jnp.zeros((H_VAR,), jnp.float32),
        "q2w": jax.random.normal(ks[13], (H_VAR, H_VAR), jnp.float32) * s,
        "q2b": jnp.zeros((H_VAR,), jnp.float32),
        "wcv": jax.random.normal(ks[14], (H_VAR, 1), jnp.float32) * s,
        "bcv": jnp.zeros((1,), jnp.float32) + jax.random.normal(ks[15], (1,), jnp.float32) * s,
        "log_std": INIT_LOG_STD * jnp.ones((ACTION_SIZE,), jnp.float32),
    }


def pack_params(p):
    """One-time packing into a single row-stacked (392, 128) parameter slab."""
    f32 = jnp.float32
    c0, c1 = 0, H_BODY                 # body branch columns [0, 32)
    v0, v1 = H_BODY, H_BODY + H_VAR    # var branch columns [32, 96)

    slab = jnp.zeros((SLAB_ROWS, PACK), f32)

    # layer 1: x(128-padded) @ W1p -> [body_h1 | var_h1 | 0]
    slab = slab.at[W1_R0:W1_R0 + OBS_DIM, c0:c1].set(p["w1"])
    slab = slab.at[W1_R0:W1_R0 + OBS_DIM, v0:v1].set(p["q1w"])

    # layer 2: block-diag(w2, q2w)
    slab = slab.at[W2_R0 + c0:W2_R0 + c1, c0:c1].set(p["w2"])
    slab = slab.at[W2_R0 + v0:W2_R0 + v1, v0:v1].set(p["q2w"])

    # heads: block-diag([wmu | wv | wc], wcv) padded to 128 output lanes
    slab = slab.at[W3_R0 + c0:W3_R0 + c1, 0:ACTION_SIZE].set(p["wmu"])
    slab = slab.at[W3_R0 + c0:W3_R0 + c1, ACTION_SIZE:ACTION_SIZE + 1].set(p["wv"])
    slab = slab.at[W3_R0 + c0:W3_R0 + c1, ACTION_SIZE + 1:ACTION_SIZE + 2].set(p["wc"])
    slab = slab.at[W3_R0 + v0:W3_R0 + v1, ACTION_SIZE + 2:ACTION_SIZE + 3].set(p["wcv"])

    # aux rows: obs stats, packed biases, post-tanh mu offset
    inv_std = jax.lax.rsqrt(jnp.maximum(p["obs_var"], VAR_CLIP))
    slab = slab.at[AUX_R0 + 0, 0:OBS_DIM].set(p["obs_mean"])
    slab = slab.at[AUX_R0 + 1, 0:OBS_DIM].set(inv_std)
    slab = slab.at[AUX_R0 + 2, c0:c1].set(p["b1"]).at[AUX_R0 + 2, v0:v1].set(p["q1b"])
    slab = slab.at[AUX_R0 + 3, c0:c1].set(p["b2"]).at[AUX_R0 + 3, v0:v1].set(p["q2b"])
    slab = slab.at[AUX_R0 + 4, 0:ACTION_SIZE].set(p["bmu"])
    slab = slab.at[AUX_R0 + 4, ACTION_SIZE].set(p["bv"][0])
    slab = slab.at[AUX_R0 + 4, ACTION_SIZE + 1].set(p["bc"][0])
    slab = slab.at[AUX_R0 + 4, ACTION_SIZE + 2].set(p["bcv"][0])
    slab = slab.at[AUX_R0 + 5, 0].set(A_LONG_SHIFT)   # offset added AFTER tanh, col 0

    return {"slab": slab, "log_std": p["log_std"]}


# ------------------------------- wrapper --------------------------------------
def _round_up(x, m):
    return ((x + m - 1) // m) * m


@jax.jit
def dcppo_forward(observation, prev_action, prev_reward, packed):
    """observation: (T, B, OBS_DIM). prev_action/prev_reward are unused because
    lstm_size=None (default), matching the PyTorch module's behavior."""
    del prev_action, prev_reward  # only consumed on the LSTM path (not built)
    t, b = observation.shape[0], observation.shape[1]
    tb = t * b

    # row tiling: one tile for small tb, 512-row tiles (parallel grid) when batched
    tb_aligned = _round_up(tb, 8)
    row_tile = tb_aligned if tb_aligned <= ROW_TILE_MAX else ROW_TILE_MAX
    tb_pad = _round_up(tb_aligned, row_tile)
    n_tiles = tb_pad // row_tile

    # lane-dense obs slab: zeros in pad lanes/rows (mean/inv_std pad lanes are 0)
    obs_flat = observation.reshape(tb, OBS_DIM).astype(jnp.float32)
    obs_pad = jnp.zeros((tb_pad, PACK), jnp.float32).at[:tb, :OBS_DIM].set(obs_flat)

    cost = pl.CostEstimate(
        flops=2 * tb_pad * 3 * PACK * PACK,
        transcendentals=5 * tb_pad * PACK,          # 3x tanh + softplus(exp, log1p)
        bytes_accessed=4 * (tb_pad * PACK + SLAB_ROWS * PACK + tb_pad * PACK),
    )

    heads_pad = pl.pallas_call(
        dcppo_kernel,
        out_shape=jax.ShapeDtypeStruct((tb_pad, PACK), jnp.float32),
        grid=(n_tiles,),
        in_specs=[
            pl.BlockSpec((row_tile, PACK), lambda i: (i, 0)),
            pl.BlockSpec((SLAB_ROWS, PACK), lambda i: (0, 0)),  # weights stay resident
        ],
        out_specs=pl.BlockSpec((row_tile, PACK), lambda i: (i, 0)),
        compiler_params=pltpu.CompilerParams(dimension_semantics=("parallel",)),
        cost_estimate=cost,
    )(obs_pad, packed["slab"])

    # slice the fused head output + restore leading dims (pure glue)
    heads = heads_pad[:tb]
    mu = heads[:, 0:ACTION_SIZE].reshape(t, b, ACTION_SIZE)
    value = heads[:, ACTION_SIZE].reshape(t, b)
    c_value = heads[:, ACTION_SIZE + 1].reshape(t, b)
    c_var_value = heads[:, ACTION_SIZE + 2].reshape(t, b)
    log_std = jnp.broadcast_to(packed["log_std"], (t, b, ACTION_SIZE))
    return mu, log_std, (value, c_value, c_var_value)


# -------------------------- pure-JAX reference --------------------------------
def dcppo_reference(observation, params):
    t, b = observation.shape[0], observation.shape[1]
    x = observation.reshape(t * b, OBS_DIM).astype(jnp.float32)
    var = jnp.maximum(params["obs_var"], VAR_CLIP)
    x = jnp.clip((x - params["obs_mean"]) / jnp.sqrt(var), -10.0, 10.0)
    h = jnp.tanh(x @ params["w1"] + params["b1"])
    h = jnp.tanh(h @ params["w2"] + params["b2"])
    mu = jnp.tanh(h @ params["wmu"] + params["bmu"]) + jnp.array([A_LONG_SHIFT, 0.0])
    v = (h @ params["wv"] + params["bv"])[:, 0]
    c = (h @ params["wc"] + params["bc"])[:, 0]
    g = jnp.tanh(x @ params["q1w"] + params["q1b"])
    g = jnp.tanh(g @ params["q2w"] + params["q2b"])
    cv = jax.nn.softplus((g @ params["wcv"] + params["bcv"])[:, 0]) * 0.1
    log_std = jnp.broadcast_to(params["log_std"], (t, b, ACTION_SIZE))
    return (mu.reshape(t, b, ACTION_SIZE), log_std,
            (v.reshape(t, b), c.reshape(t, b), cv.reshape(t, b)))


# --------------------------------- main ---------------------------------------
if __name__ == "__main__":
    key = jax.random.PRNGKey(0)
    k_obs, k_act, k_rew, k_par = jax.random.split(key, 4)

    observation = jax.random.normal(k_obs, (T, B, OBS_DIM), jnp.float32)
    prev_action = jax.random.normal(k_act, (T, B, ACTION_SIZE), jnp.float32)
    prev_reward = jax.random.normal(k_rew, (T, B), jnp.float32)
    params = make_params(k_par)
    packed = pack_params(params)   # one-time parameter packing

    mu, log_std, (v, c, cv) = dcppo_forward(observation, prev_action,
                                            prev_reward, packed)
    jax.block_until_ready((mu, log_std, v, c, cv))

    # sanity check against the pure-JAX reference (unpacked params)
    mu_r, log_std_r, (v_r, c_r, cv_r) = dcppo_reference(observation, params)
    np.testing.assert_allclose(np.asarray(mu), np.asarray(mu_r), atol=1e-5, rtol=1e-5)
    np.testing.assert_allclose(np.asarray(log_std), np.asarray(log_std_r), atol=1e-6)
    np.testing.assert_allclose(np.asarray(v), np.asarray(v_r), atol=1e-5, rtol=1e-5)
    np.testing.assert_allclose(np.asarray(c), np.asarray(c_r), atol=1e-5, rtol=1e-5)
    np.testing.assert_allclose(np.asarray(cv), np.asarray(cv_r), atol=1e-5, rtol=1e-5)

    assert mu.shape == (T, B, ACTION_SIZE)
    assert log_std.shape == (T, B, ACTION_SIZE)
    assert v.shape == (T, B) and c.shape == (T, B) and cv.shape == (T, B)

    print("KERNEL_OK")
</pallas_src>

<mosaic_0001>
module attributes {stable_mosaic.version = 11 : i64} {
  func.func @dcppo_kernel(%arg0: i32, %arg1: memref<16x128xf32, #tpu.memory_space<vmem>>, %arg2: memref<392x128xf32, #tpu.memory_space<vmem>>, %arg3: memref<16x128xf32, #tpu.memory_space<vmem>>) attributes {dimension_semantics = [#tpu.dimension_semantics<parallel>], iteration_bounds = array<i64: 1>, scalar_prefetch = 0 : i64, scratch_operands = 0 : i64, tpu.core_type = #tpu.core_type<tc>, window_params = [{transform_indices = @transform_0, window_bounds = array<i64: 16, 128>}, {pipeline_mode = #tpu.pipeline_mode<synchronous>, transform_indices = @transform_1, window_bounds = array<i64: 392, 128>}, {transform_indices = @transform_2, window_bounds = array<i64: 16, 128>}]} {
    %c0 = arith.constant 0 : index
    %c0_0 = arith.constant 0 : index
    %0 = vector.load %arg2[%c0, %c0_0] : memref<392x128xf32, #tpu.memory_space<vmem>>, vector<128x128xf32>
    %c128 = arith.constant 128 : index
    %c0_1 = arith.constant 0 : index
    %1 = vector.load %arg2[%c128, %c0_1] : memref<392x128xf32, #tpu.memory_space<vmem>>, vector<128x128xf32>
    %c256 = arith.constant 256 : index
    %c0_2 = arith.constant 0 : index
    %2 = vector.load %arg2[%c256, %c0_2] : memref<392x128xf32, #tpu.memory_space<vmem>>, vector<128x128xf32>
    %c384 = arith.constant 384 : index
    %c0_3 = arith.constant 0 : index
    %3 = vector.load %arg2[%c384, %c0_3] : memref<392x128xf32, #tpu.memory_space<vmem>>, vector<8x128xf32>
    %4 = vector.extract_strided_slice %3 {offsets = [0, 0], sizes = [1, 128], strides = [1, 1]} : vector<8x128xf32> to vector<1x128xf32>
    %5 = vector.extract_strided_slice %3 {offsets = [1, 0], sizes = [1, 128], strides = [1, 1]} : vector<8x128xf32> to vector<1x128xf32>
    %6 = vector.extract_strided_slice %3 {offsets = [2, 0], sizes = [1, 128], strides = [1, 1]} : vector<8x128xf32> to vector<1x128xf32>
    %7 = vector.extract_strided_slice %3 {offsets = [3, 0], sizes = [1, 128], strides = [1, 1]} : vector<8x128xf32> to vector<1x128xf32>
    %8 = vector.extract_strided_slice %3 {offsets = [4, 0], sizes = [1, 128], strides = [1, 1]} : vector<8x128xf32> to vector<1x128xf32>
    %9 = vector.extract_strided_slice %3 {offsets = [5, 0], sizes = [1, 128], strides = [1, 1]} : vector<8x128xf32> to vector<1x128xf32>
    %c0_4 = arith.constant 0 : index
    %c0_5 = arith.constant 0 : index
    %10 = vector.load %arg1[%c0_4, %c0_5] : memref<16x128xf32, #tpu.memory_space<vmem>>, vector<16x128xf32>
    %11 = vector.broadcast %4 : vector<1x128xf32> to vector<16x128xf32>
    %12 = arith.subf %10, %11 : vector<16x128xf32>
    %13 = vector.broadcast %5 : vector<1x128xf32> to vector<16x128xf32>
    %14 = arith.mulf %12, %13 : vector<16x128xf32>
    %cst = arith.constant -1.000000e+01 : f32
    %cst_6 = arith.constant 1.000000e+01 : f32
    %15 = vector.broadcast %cst : f32 to vector<16x128xf32>
    %16 = arith.maximumf %15, %14 : vector<16x128xf32>
    %17 = vector.broadcast %cst_6 : f32 to vector<16x128xf32>
    %18 = arith.minimumf %17, %16 : vector<16x128xf32>
    %cst_7 = arith.constant dense<0.000000e+00> : vector<16x128xf32>
    %19 = tpu.matmul %18, %0, %cst_7 {dimension_numbers = #tpu.dot_dimension_numbers<[1], [0], [0], [1], [0, 0, 1, 1], [], []>} : vector<16x128xf32>, vector<128x128xf32>, vector<16x128xf32> -> vector<16x128xf32>
    %20 = vector.broadcast %6 : vector<1x128xf32> to vector<16x128xf32>
    %21 = arith.addf %19, %20 : vector<16x128xf32>
    %22 = math.tanh %21 : vector<16x128xf32>
    %cst_8 = arith.constant dense<0.000000e+00> : vector<16x128xf32>
    %23 = tpu.matmul %22, %1, %cst_8 {dimension_numbers = #tpu.dot_dimension_numbers<[1], [0], [0], [1], [0, 0, 1, 1], [], []>} : vector<16x128xf32>, vector<128x128xf32>, vector<16x128xf32> -> vector<16x128xf32>
    %24 = vector.broadcast %7 : vector<1x128xf32> to vector<16x128xf32>
    %25 = arith.addf %23, %24 : vector<16x128xf32>
    %26 = math.tanh %25 : vector<16x128xf32>
    %cst_9 = arith.constant dense<0.000000e+00> : vector<16x128xf32>
    %27 = tpu.matmul %26, %2, %cst_9 {dimension_numbers = #tpu.dot_dimension_numbers<[1], [0], [0], [1], [0, 0, 1, 1], [], []>} : vector<16x128xf32>, vector<128x128xf32>, vector<16x128xf32> -> vector<16x128xf32>
    %28 = vector.broadcast %8 : vector<1x128xf32> to vector<16x128xf32>
    %29 = arith.addf %27, %28 : vector<16x128xf32>
    %30 = tpu.iota {dimensions = array<i32: 1>} : vector<16x128xi32>
    %31 = math.tanh %29 : vector<16x128xf32>
    %32 = vector.broadcast %9 : vector<1x128xf32> to vector<16x128xf32>
    %33 = arith.addf %31, %32 : vector<16x128xf32>
    %cst_10 = arith.constant 0.000000e+00 : f32
    %34 = vector.broadcast %cst_10 : f32 to vector<16x128xf32>
    %35 = arith.maximumf %29, %34 : vector<16x128xf32>
    %36 = vector.broadcast %cst_10 : f32 to vector<16x128xf32>
    %37 = arith.subf %29, %36 : vector<16x128xf32>
    %38 = arith.cmpf one, %37, %37 : vector<16x128xf32>
    %39 = vector.broadcast %cst_10 : f32 to vector<16x128xf32>
    %40 = arith.addf %29, %39 : vector<16x128xf32>
    %41 = math.absf %37 : vector<16x128xf32>
    %cst_11 = arith.constant 0.000000e+00 : f32
    %42 = vector.broadcast %cst_11 : f32 to vector<16x128xf32>
    %43 = arith.subf %42, %41 : vector<16x128xf32>
    %44 = math.exp %43 : vector<16x128xf32>
    %45 = math.log1p %44 : vector<16x128xf32>
    %46 = arith.addf %35, %45 : vector<16x128xf32>
    %47 = arith.select %38, %40, %46 : vector<16x128xi1>, vector<16x128xf32>
    %cst_12 = arith.constant 1.000000e-01 : f32
    %48 = vector.broadcast %cst_12 : f32 to vector<16x128xf32>
    %49 = arith.mulf %47, %48 : vector<16x128xf32>
    %c2_i32 = arith.constant 2 : i32
    %50 = vector.broadcast %c2_i32 : i32 to vector<16x128xi32>
    %51 = arith.cmpi slt, %30, %50 : vector<16x128xi32>
    %c4_i32 = arith.constant 4 : i32
    %52 = vector.broadcast %c4_i32 : i32 to vector<16x128xi32>
    %53 = arith.cmpi eq, %30, %52 : vector<16x128xi32>
    %54 = arith.select %53, %49, %29 : vector<16x128xi1>, vector<16x128xf32>
    %55 = arith.select %51, %33, %54 : vector<16x128xi1>, vector<16x128xf32>
    %c0_13 = arith.constant 0 : index
    %c0_14 = arith.constant 0 : index
    %56 = vector.load %arg3[%c0_13, %c0_14] : memref<16x128xf32, #tpu.memory_space<vmem>>, vector<16x128xf32>
    tpu.vector_store %arg3[%c0_13, %c0_14], %55 {strides = array<i32>} : memref<16x128xf32, #tpu.memory_space<vmem>>, vector<16x128xf32>,
    return
  }
  func.func @transform_0(%arg0: i32) -> (i32, i32) {
    %c0_i32 = arith.constant 0 : i32
    %c0_i32_0 = arith.constant 0 : i32
    return %arg0, %c0_i32 : i32, i32
  }
  func.func @transform_1(%arg0: i32) -> (i32, i32) {
    %c0_i32 = arith.constant 0 : i32
    %c0_i32_0 = arith.constant 0 : i32
    %c0_i32_1 = arith.constant 0 : i32
    return %c0_i32, %c0_i32_0 : i32, i32
  }
  func.func @transform_2(%arg0: i32) -> (i32, i32) {
    %c0_i32 = arith.constant 0 : i32
    %c0_i32_0 = arith.constant 0 : i32
    return %arg0, %c0_i32 : i32, i32
  }
}

</mosaic_0001>

<llo_original>
// kernel: squeeze.3
$region0: #{squeeze.3}
  %s0 = inlined_call_operand.vmem [shape: f32[16], index: 0, kind: input, shape index: {}]
  %s1 = inlined_call_operand.vmem [shape: f32[8,2], index: 1, kind: output, shape index: {}]
  $region1: #{squeeze.3} parent=0
    #allocation0 [shape = 'u8[4096]{0}', space=vmem, size = 0x1000, scoped, tag = 'scoped mem for input reshape']
    %s3 = ssub.s32 2, 1
    %v4 = vld [vmem:[%s0] sm:%s3]
    %5 = vst [vmem:[#allocation0] sm:%s3] %v4
    %v6 = vld [vmem:[#allocation0] sm:$0x1]
    %vm7 = vcmask 15360
    %8 = vst.msk [vmem:[%s1] sm:$0x1] %vm7, %v6
    %v9 = vld [vmem:[#allocation0] sm:$0x1]
    %10 = vrot.lane.b32.xlu0 %v9, 126
    %v11 = vpop.permute.xlu0 %10
    %vm12 = vcmask 15360
    %s13 = scalar_lea.vmem %s1, 1
    %14 = vst.msk [vmem:[%s13] sm:$0x1] %vm12, %v11
    %v15 = vld [vmem:[#allocation0] sm:$0x1]
    %16 = vrot.lane.b32.xlu0 %v15, 124
    %v17 = vpop.permute.xlu0 %16
    %vm18 = vcmask 15360
    %s19 = scalar_lea.vmem %s1, 2
    %20 = vst.msk [vmem:[%s19] sm:$0x1] %vm18, %v17
    %v21 = vld [vmem:[#allocation0] sm:$0x1]
    %22 = vrot.lane.b32.xlu0 %v21, 122
    %v23 = vpop.permute.xlu0 %22
    %vm24 = vcmask 15360
    %s25 = scalar_lea.vmem %s1, 3
    %26 = vst.msk [vmem:[%s25] sm:$0x1] %vm24, %v23
    %v27 = vld [vmem:[#allocation0] sm:$0x1]
    %28 = vrot.lane.b32.xlu0 %v27, 120
    %v29 = vpop.permute.xlu0 %28
    %vm30 = vcmask 15360
    %s31 = scalar_lea.vmem %s1, 4
    %32 = vst.msk [vmem:[%s31] sm:$0x1] %vm30, %v29
    %v33 = vld [vmem:[#allocation0] sm:$0x1]
    %34 = vrot.lane.b32.xlu0 %v33, 118
    %v35 = vpop.permute.xlu0 %34
    %vm36 = vcmask 15360
    %s37 = scalar_lea.vmem %s1, 5
    %38 = vst.msk [vmem:[%s37] sm:$0x1] %vm36, %v35
    %v39 = vld [vmem:[#allocation0] sm:$0x1]
    %40 = vrot.lane.b32.xlu0 %v39, 116
    %v41 = vpop.permute.xlu0 %40
    %vm42 = vcmask 15360
    %s43 = scalar_lea.vmem %s1, 6
    %44 = vst.msk [vmem:[%s43] sm:$0x1] %vm42, %v41
    %v45 = vld [vmem:[#allocation0] sm:$0x1]
    %46 = vrot.lane.b32.xlu0 %v45, 114
    %v47 = vpop.permute.xlu0 %46
    %vm48 = vcmask 15360
    %s49 = scalar_lea.vmem %s1, 7
    %50 = vst.msk [vmem:[%s49] sm:$0x1] %vm48, %v47

// kernel: dcppo_forward.1
$region0: #{dcppo_forward.1}
  #allocation0 [shape = 'u32[]', space=smem, size = 0x4, offset = 0x4, fixed_abs, tag = 'smem constant byte address 0x4 - core index']
  #allocation1 [shape = 'u32[72,128]{1,0:T(1,128)}', space=vmem, size = 0x9000, scoped, tag = 'internal scratch']
  %s0 = inlined_call_operand.vmem [shape: f32[16,128], index: 0, kind: input, shape index: {}]
  %s1 = inlined_call_operand.hbm [shape: f32[392,128], index: 1, kind: input, shape index: {}]
  %s2 = inlined_call_operand.vmem [shape: f32[16,128], index: 2, kind: output, shape index: {}]
  %s3 = sld [smem:[#allocation0]]
  $region22: #{dcppo_forward.1} parent=0
    _
  %s5 = ssub.s32 1, %s3
  %s6 = scalar_select 0, %s5, %s3
  $region1: #{dcppo_forward.1} parent=0
    #allocation2 [shape = 'u8[200704]{0}', space=vmem, size = 0x31000, scoped, tag = 'input window, operand 1, single buffered']
    #allocation3 [shape = 's32[1]{0}', space=sflag, size = 0x4, scoped, tag = 'scoped memory for dcppo_forward.1']
    %7 = vsyncpa [#allocation3], 0
    // Predicated region
    $region2: #{dcppo_forward.1} parent=1 // pred_check
      _
    $region3: #{dcppo_forward.1} parent=1 // pred_check_branch
      %9 = sbr.rel (0) target = $region5
    $region4: #{dcppo_forward.1} parent=1 // pred_region
      _
    $region5: #{dcppo_forward.1} parent=1 // pred_fallthru
      _
    // Predicated region
    $region6: #{dcppo_forward.1} parent=1 // pred_check
      _
    $region7: #{dcppo_forward.1} parent=1 // pred_check_branch
      %11 = sbr.rel (0) target = $region9
    $region8: #{dcppo_forward.1} parent=1 // pred_region
      %13 = vsyncadd [#allocation3], 0
      %s14 = sshll.u32 %s1, 4
      %s15 = int_to_ptr.hbm [resolvable:$true] %s14
      %s16 = sshll.u32 [#allocation2], 4
      %s17 = int_to_ptr.vmem [resolvable:$true] %s16
      %22 = dma.hbm_to_vmem [thread:$0]  %s15, 6272, %s17, [#allocation3], 128, 128, 8
    $region9: #{dcppo_forward.1} parent=1 // pred_fallthru
      _
    // Predicated region
    $region10: #{dcppo_forward.1} parent=1 // pred_check
      _
    $region11: #{dcppo_forward.1} parent=1 // pred_check_branch
      %24 = sbr.rel (0) target = $region13
    $region12: #{dcppo_forward.1} parent=1 // pred_region
      %26 = dma.done [#allocation3], 6272
    $region13: #{dcppo_forward.1} parent=1 // pred_fallthru
      _
    %v27 = vld [vmem:[#allocation2] sm:$0xff]
    %v28 = vld [vmem:[#allocation2 + $0x8] sm:$0xff]
    %v29 = vld [vmem:[#allocation2 + $0x10] sm:$0xff]
    %v30 = vld [vmem:[#allocation2 + $0x18] sm:$0xff]
    %v31 = vld [vmem:[#allocation2 + $0x20] sm:$0xff]
    %v32 = vld [vmem:[#allocation2 + $0x28] sm:$0xff]
    %v33 = vld [vmem:[#allocation2 + $0x30] sm:$0xff]
    %v34 = vld [vmem:[#allocation2 + $0x38] sm:$0xff]
    %v35 = vld [vmem:[#allocation2 + $0x40] sm:$0xff]
    %v36 = vld [vmem:[#allocation2 + $0x48] sm:$0xff]
    %v37 = vld [vmem:[#allocation2 + $0x50] sm:$0xff]
    %v38 = vld [vmem:[#allocation2 + $0x58] sm:$0xff]
    %v39 = vld [vmem:[#allocation2 + $0x60] sm:$0xff]
    %v40 = vld [vmem:[#allocation2 + $0x68] sm:$0xff]
    %v41 = vld [vmem:[#allocation2 + $0x70] sm:$0xff]
    %v42 = vld [vmem:[#allocation2 + $0x78] sm:$0xff]
    %v43 = vld [vmem:[#allocation2 + $0x80] sm:$0xff]
    %v44 = vld [vmem:[#allocation2 + $0x88] sm:$0xff]
    %v45 = vld [vmem:[#allocation2 + $0x90] sm:$0xff]
    %v46 = vld [vmem:[#allocation2 + $0x98] sm:$0xff]
    %v47 = vld [vmem:[#allocation2 + $0xa0] sm:$0xff]
    %v48 = vld [vmem:[#allocation2 + $0xa8] sm:$0xff]
    %v49 = vld [vmem:[#allocation2 + $0xb0] sm:$0xff]
    %v50 = vld [vmem:[#allocation2 + $0xb8] sm:$0xff]
    %v51 = vld [vmem:[#allocation2 + $0xc0] sm:$0xff]
    %v52 = vld [vmem:[#allocation2 + $0xc8] sm:$0xff]
    %v53 = vld [vmem:[#allocation2 + $0xd0] sm:$0xff]
    %v54 = vld [vmem:[#allocation2 + $0xd8] sm:$0xff]
    %v55 = vld [vmem:[#allocation2 + $0xe0] sm:$0xff]
    %v56 = vld [vmem:[#allocation2 + $0xe8] sm:$0xff]
    %v57 = vld [vmem:[#allocation2 + $0xf0] sm:$0xff]
    %v58 = vld [vmem:[#allocation2 + $0xf8] sm:$0xff]
    %v59 = vld [vmem:[#allocation2 + $0x100] sm:$0xff]
    %v60 = vld [vmem:[#allocation2 + $0x108] sm:$0xff]
    %v61 = vld [vmem:[#allocation2 + $0x110] sm:$0xff]
    %v62 = vld [vmem:[#allocation2 + $0x118] sm:$0xff]
    %v63 = vld [vmem:[#allocation2 + $0x120] sm:$0xff]
    %v64 = vld [vmem:[#allocation2 + $0x128] sm:$0xff]
    %v65 = vld [vmem:[#allocation2 + $0x130] sm:$0xff]
    %v66 = vld [vmem:[#allocation2 + $0x138] sm:$0xff]
    %v67 = vld [vmem:[#allocation2 + $0x140] sm:$0xff]
    %v68 = vld [vmem:[#allocation2 + $0x148] sm:$0xff]
    %v69 = vld [vmem:[#allocation2 + $0x150] sm:$0xff]
    %v70 = vld [vmem:[#allocation2 + $0x158] sm:$0xff]
    %v71 = vld [vmem:[#allocation2 + $0x160] sm:$0xff]
    %v72 = vld [vmem:[#allocation2 + $0x168] sm:$0xff]
    %v73 = vld [vmem:[#allocation2 + $0x170] sm:$0xff]
    %v74 = vld [vmem:[#allocation2 + $0x178] sm:$0xff]
    %v75 = vld [vmem:[#allocation2 + $0x180] sm:$0xff]
    %v76 = vld [vmem:[%s0] sm:$0xff]
    %v77 = vld [vmem:[%s0 + $0x8] sm:$0xff]
    %v78 = vperm.slane %v75, 0
    %v79 = vsub.f32 %v76, %v78
    %v80 = vsub.f32 %v77, %v78
    %v81 = vperm.slane %v75, 1
    %v82 = vmul.f32 %v79, %v81
    %v83 = vmul.f32 %v80, %v81
    %v84 = vmax.f32 %v82, -10.0
    %v85 = vmax.f32 %v83, -10.0
    %v86 = vmin.f32 %v84, 10.0
    %v87 = vmin.f32 %v85, 10.0
    %v88 = vperm.slane %v75, 2
    %89 = vmatpush.msra.mxu0 %v42
    %90 = vmatpush.msra.mxu0 %v41
    %91 = vmatpush.msra.mxu0 %v40
    %92 = vmatpush.msra.mxu0 %v39
    %93 = vmatpush.msra.mxu0 %v38
    %94 = vmatpush.msra.mxu0 %v37
    %95 = vmatpush.msra.mxu0 %v36
    %96 = vmatpush.msra.mxu0 %v35
    %97 = vmatpush.msra.mxu0 %v34
    %98 = vmatpush.msra.mxu0 %v33
    %99 = vmatpush.msra.mxu0 %v32
    %100 = vmatpush.msra.mxu0 %v31
    %101 = vmatpush.msra.mxu0 %v30
    %102 = vmatpush.msra.mxu0 %v29
    %103 = vmatpush.msra.mxu0 %v28
    %104 = vmatpush.msra.mxu0 %v27
    %105 = vmatmul.f32.gmra.mxu0 %v86
    %v106 = vpop.f32.mrf.mxu0
    %v107 = vadd.f32 %v88, %v106
    %108 = vmatmul.f32.gmra.mxu0 %v87
    %v109 = vpop.f32.mrf.mxu0
    %v110 = vadd.f32 %v88, %v109
    %111 = vdwg.mxu0
    %v112 = vtanh.pop %v107
    %v113 = vtanh.pop %v110
    %v114 = vperm.slane %v75, 3
    %115 = vmatpush.msra.mxu0 %v58
    %116 = vmatpush.msra.mxu0 %v57
    %117 = vmatpush.msra.mxu0 %v56
    %118 = vmatpush.msra.mxu0 %v55
    %119 = vmatpush.msra.mxu0 %v54
    %120 = vmatpush.msra.mxu0 %v53
    %121 = vmatpush.msra.mxu0 %v52
    %122 = vmatpush.msra.mxu0 %v51
    %123 = vmatpush.msra.mxu0 %v50
    %124 = vmatpush.msra.mxu0 %v49
    %125 = vmatpush.msra.mxu0 %v48
    %126 = vmatpush.msra.mxu0 %v47
    %127 = vmatpush.msra.mxu0 %v46
    %128 = vmatpush.msra.mxu0 %v45
    %129 = vmatpush.msra.mxu0 %v44
    %130 = vmatpush.msra.mxu0 %v43
    %131 = vmatmul.f32.gmra.mxu0 %v112
    %v132 = vpop.f32.mrf.mxu0
    %v133 = vadd.f32 %v114, %v132
    %134 = vmatmul.f32.gmra.mxu0 %v113
    %v135 = vpop.f32.mrf.mxu0
    %v136 = vadd.f32 %v114, %v135
    %137 = vdwg.mxu0
    %v138 = vtanh.pop %v133
    %v139 = vtanh.pop %v136
    %v140 = vperm.slane %v75, 4
    %141 = vmatpush.msra.mxu0 %v74
    %142 = vmatpush.msra.mxu0 %v73
    %143 = vmatpush.msra.mxu0 %v72
    %144 = vmatpush.msra.mxu0 %v71
    %145 = vmatpush.msra.mxu0 %v70
    %146 = vmatpush.msra.mxu0 %v69
    %147 = vmatpush.msra.mxu0 %v68
    %148 = vmatpush.msra.mxu0 %v67
    %149 = vmatpush.msra.mxu0 %v66
    %150 = vmatpush.msra.mxu0 %v65
    %151 = vmatpush.msra.mxu0 %v64
    %152 = vmatpush.msra.mxu0 %v63
    %153 = vmatpush.msra.mxu0 %v62
    %154 = vmatpush.msra.mxu0 %v61
    %155 = vmatpush.msra.mxu0 %v60
    %156 = vmatpush.msra.mxu0 %v59
    %157 = vmatmul.f32.gmra.mxu0 %v138
    %v158 = vpop.f32.mrf.mxu0
    %v159 = vadd.f32 %v140, %v158
    %160 = vmatmul.f32.gmra.mxu0 %v139
    %v161 = vpop.f32.mrf.mxu0
    %v162 = vadd.f32 %v140, %v161
    %163 = vdwg.mxu0
    %v164 = vlaneseq
    %v165 = vand.u32 %v164, 127
    %v166 = vtanh.pop %v159
    %v167 = vtanh.pop %v162
    %v168 = vperm.slane %v75, 5
    %v169 = vadd.f32 %v166, %v168
    %v170 = vadd.f32 %v167, %v168
    %v171 = vmax.f32 %v159, 0.0
    %v172 = vmax.f32 %v162, 0.0
    %vm173 = vcmp.ne.f32.partialorder %v159, %v159
    %vm174 = vcmp.ne.f32.partialorder %v162, %v162
    %v175 = vadd.f32 %v159, 0.0
    %v176 = vadd.f32 %v162, 0.0
    %v177 = vand.u32 2147483647, %v159
    %v178 = vand.u32 2147483647, %v162
    %v179 = vsub.f32 0.0, %v177
    %v180 = vsub.f32 0.0, %v178
    %v181 = vmul.f32 %v179, 1.442695
    %v182 = vpow.pop %v181
    %v183 = vmul.f32 %v180, 1.442695
    %v184 = vpow.pop %v183
    %v185 = vadd.f32 %v182, 1.0
    %v186 = vlog2.pop %v185
    %v187 = vmul.f32 %v186, 0.6931472
    %v188 = vmul.f32 -0.5, %v182
    %v189 = vadd.f32 %v188, 1.0
    %v190 = vmul.f32 %v189, %v182
    %v191 = vand.u32 2147483647, %v182
    %vm192 = vcmp.lt.f32.partialorder %v191, 0.0004427343
    %v193 = vsel %vm192, %v190, %v187
    %v194 = vadd.f32 %v184, 1.0
    %v195 = vlog2.pop %v194
    %v196 = vmul.f32 %v195, 0.6931472
    %v197 = vmul.f32 -0.5, %v184
    %v198 = vadd.f32 %v197, 1.0
    %v199 = vmul.f32 %v198, %v184
    %v200 = vand.u32 2147483647, %v184
    %vm201 = vcmp.lt.f32.partialorder %v200, 0.0004427343
    %v202 = vsel %vm201, %v199, %v196
    %v203 = vadd.f32 %v171, %v193
    %v204 = vadd.f32 %v172, %v202
    %v205 = vsel %vm173, %v175, %v203
    %v206 = vsel %vm174, %v176, %v204
    %v207 = vmul.f32 %v205, 0.1
    %v208 = vmul.f32 %v206, 0.1
    %vm209 = vcmp.lt.s32.totalorder %v165, 2
    %vm210 = vcmp.eq.s32.totalorder %v165, 4
    %v211 = vsel %vm210, %v207, %v159
    %v212 = vsel %vm210, %v208, %v162
    %v213 = vsel %vm209, %v169, %v211
    %v214 = vsel %vm209, %v170, %v212
    %215 = vst [vmem:[%s2] sm:$0xff] %v213
    %216 = vst [vmem:[%s2 + $0x8] sm:$0xff] %v214
    // Predicated region
    $region14: #{dcppo_forward.1} parent=1 // pred_check
      _
    $region15: #{dcppo_forward.1} parent=1 // pred_check_branch
      %218 = sbr.rel (0) target = $region17
    $region16: #{dcppo_forward.1} parent=1 // pred_region
      _
    $region17: #{dcppo_forward.1} parent=1 // pred_fallthru
      _
    // Predicated region
    $region18: #{dcppo_forward.1} parent=1 // pred_check
      _
    $region19: #{dcppo_forward.1} parent=1 // pred_check_branch
      %220 = sbr.rel (0) target = $region21
    $region20: #{dcppo_forward.1} parent=1 // pred_region
      _
    $region21: #{dcppo_forward.1} parent=1 // pred_fallthru
      _
    %221 = vsyncpa [#allocation3], 1

</llo_original>
